<compile_context>
chip_gen: v6e
topology: v6e:2x2x1
jax: 0.10.0
libtpu: 0.0.40
codegen_flags: <defaults>
</compile_context>

<pallas_src>
from functools import partial

import jax
import jax.numpy as jnp
from jax import lax
from jax.experimental import pallas as pl
from jax.experimental.pallas import tpu as pltpu


_SMALL_WINDOW_BYTES = 256 << 10   # below this, lax.dynamic_slice beats a kernel launch
_V7X_SPLIT_BYTES = 16 << 20       # only split the copy on v7x for >=16 MiB windows


def _is_v7x():
    try:
        kind = jax.devices()[0].device_kind.lower()
    except Exception:
        return False
    return "v7" in kind


def _pick_num_chunks(window_bytes, seq_len):
    """How many overlapped DMAs to use for the window copy.

    v5e/v6e (single TensorCore): one big contiguous DMA is strictly best.
    v7x: two large overlapped chunks for big windows (amortizes descriptor cost
    while keeping each DMA >= 8 MiB at 3.2 TB/s HBM bandwidth)."""
    if _is_v7x() and window_bytes >= _V7X_SPLIT_BYTES:
        return max(1, min(2, seq_len))
    return 1


def _pos_emb_copy_kernel(num_chunks, chunk_rows, last_rows,
                         offset_ref, w_hbm, out_hbm, copy_sems):
    # offset_ref : SMEM scalar-prefetch, shape (1,), int32 position offset
    # w_hbm      : full embedding table, left in HBM (memory_space=pl.ANY)
    # out_hbm    : (seq_len, emb) output slab, left in HBM (memory_space=pl.ANY)
    # copy_sems  : (num_chunks,) DMA completion semaphores
    off = offset_ref[0]
    dmas = []
    # Start ALL chunk copies before waiting on any -> overlapped outstanding DMAs.
    for c in range(num_chunks):                      # static unrolled loop
        rows = last_rows if c == num_chunks - 1 else chunk_rows
        dma = pltpu.make_async_copy(
            w_hbm.at[pl.ds(off + c * chunk_rows, rows), :],
            out_hbm.at[pl.ds(c * chunk_rows, rows), :],
            copy_sems.at[c],
        )
        dma.start()
        dmas.append(dma)
    for dma in dmas:
        dma.wait()


def learned_positional_embedding(input_seq, weights, offset=0, *, force_pallas=False):
    """JAX/Pallas equivalent of LearnedPositionalEmbedding.forward.

    input_seq : (batch, seq_len) integer tokens (only the shape is used).
    weights   : (max_length, embedding_size) embedding table.
    offset    : position offset (Python int or int32 scalar/array).
    Returns   : (batch, seq_len, embedding_size), dtype of `weights`.
    """
    batch, seq_len = input_seq.shape
    max_length, emb = weights.shape

    if seq_len > max_length:
        raise ValueError(
            f"seq_len={seq_len} exceeds embedding table length {max_length}"
        )
    if seq_len == 0:
        return jnp.zeros((batch, 0, emb), dtype=weights.dtype)

    # Static offsets: fail early with a clear message.  Traced offsets: clamp
    # so the DMA can never hit the (hard-faulting) runtime bounds check.
    if isinstance(offset, int):
        if offset < 0 or offset + seq_len > max_length:
            raise ValueError(
                f"positions [{offset}, {offset + seq_len}) out of range for an "
                f"embedding table with {max_length} rows"
            )
    offset_scalar = jnp.clip(
        jnp.asarray(offset, dtype=jnp.int32), 0, max_length - seq_len
    )

    window_bytes = seq_len * emb * jnp.dtype(weights.dtype).itemsize

    # Fast path: tiny windows are dominated by kernel-launch + DMA setup cost;
    # a fused dynamic_slice is cheaper and lets XLA fold it into the consumer.
    if window_bytes <= _SMALL_WINDOW_BYTES and not force_pallas:
        slab = lax.dynamic_slice(weights, (offset_scalar, jnp.int32(0)), (seq_len, emb))
        return jnp.broadcast_to(slab[None, :, :], (batch, seq_len, emb))

    num_chunks = _pick_num_chunks(window_bytes, seq_len)
    chunk_rows = pl.cdiv(seq_len, num_chunks)
    last_rows = seq_len - (num_chunks - 1) * chunk_rows
    assert last_rows > 0

    offset_arr = jnp.reshape(offset_scalar, (1,))

    slab = pl.pallas_call(
        partial(_pos_emb_copy_kernel, num_chunks, chunk_rows, last_rows),
        out_shape=jax.ShapeDtypeStruct((seq_len, emb), weights.dtype),
        grid_spec=pltpu.PrefetchScalarGridSpec(
            num_scalar_prefetch=1,
            grid=(1,),
            in_specs=[
                # Embedding table stays in HBM; we only DMA the needed window.
                pl.BlockSpec(memory_space=pl.ANY),
            ],
            out_specs=pl.BlockSpec(memory_space=pl.ANY),
            scratch_shapes=[pltpu.SemaphoreType.DMA((num_chunks,))],
        ),
        compiler_params=pltpu.CompilerParams(
            dimension_semantics=("arbitrary",),
        ),
    )(offset_arr, weights)

    # Lazy batch expand (mirrors torch's .expand(), which is a view not a copy).
    return jnp.broadcast_to(slab[None, :, :], (batch, seq_len, emb))


if __name__ == "__main__":
    key = jax.random.PRNGKey(0)
    k_w, k_x = jax.random.split(key)

    batch = 2
    seq_len = 8
    embedding_size = 32
    max_length = 64
    offset = 3

    # Deterministic "nn.Embedding"-style weights: N(0, 1), float32.
    weights = jax.random.normal(k_w, (max_length, embedding_size), dtype=jnp.float32)
    # Token ids — values are irrelevant to the forward pass, only the shape.
    input_seq = jax.random.randint(k_x, (batch, seq_len), 0, max_length, dtype=jnp.int32)

    # Pure-JAX reference: weights[offset + arange(seq_len)] expanded over batch.
    positions = offset + jnp.arange(seq_len)
    ref = jnp.broadcast_to(
        weights[positions][None, :, :], (batch, seq_len, embedding_size)
    )

    # 1) Exercise the Pallas DMA-copy kernel (force past the small-window fast path).
    out_kernel = learned_positional_embedding(
        input_seq, weights, offset=offset, force_pallas=True
    )
    out_kernel = jax.block_until_ready(out_kernel)
    assert out_kernel.shape == (batch, seq_len, embedding_size)
    assert out_kernel.dtype == jnp.float32
    assert jnp.allclose(out_kernel, ref), "Pallas kernel output does not match reference"

    # 2) Exercise the small-window fast path (what production would take at this size).
    out_fast = learned_positional_embedding(input_seq, weights, offset=offset)
    out_fast = jax.block_until_ready(out_fast)
    assert jnp.allclose(out_fast, ref), "Fast-path output does not match reference"

    print("KERNEL_OK")
</pallas_src>

<mosaic_0001>
module attributes {stable_mosaic.version = 11 : i64} {
  func.func @_pos_emb_copy_kernel(%arg0: i32, %arg1: memref<1xi32, #tpu.memory_space<smem>>, %arg2: memref<64x32xf32, #tpu.memory_space<any>>, %arg3: memref<8x32xf32, #tpu.memory_space<any>>, %arg4: memref<1x!tpu.dma_semaphore, #tpu.memory_space<semaphore_mem>>) attributes {dimension_semantics = [#tpu.dimension_semantics<arbitrary>], iteration_bounds = array<i64: 1>, scalar_prefetch = 1 : i64, scratch_operands = 1 : i64, tpu.core_type = #tpu.core_type<tc>, window_params = [{}, {}]} {
    %c0 = arith.constant 0 : index
    %0 = memref.load %arg1[%c0] : memref<1xi32, #tpu.memory_space<smem>>
    %c0_i32 = arith.constant 0 : i32
    %1 = arith.addi %0, %c0_i32 : i32
    %c0_i32_0 = arith.constant 0 : i32
    %c0_i32_1 = arith.constant 0 : i32
    %2 = tpu.memref_slice %arg2[%1, %c0_i32_1] : memref<64x32xf32, #tpu.memory_space<any>> -> memref<8x32xf32, #tpu.memory_space<any>>
    %c0_i32_2 = arith.constant 0 : i32
    %c0_i32_3 = arith.constant 0 : i32
    %3 = tpu.memref_slice %arg3[%c0_i32_2, %c0_i32_3] : memref<8x32xf32, #tpu.memory_space<any>> -> memref<8x32xf32, #tpu.memory_space<any>>
    %4 = tpu.memref_slice %arg4[%c0_i32_0] : memref<1x!tpu.dma_semaphore, #tpu.memory_space<semaphore_mem>> -> memref<1x!tpu.dma_semaphore, #tpu.memory_space<semaphore_mem>>
    %5 = tpu.memref_squeeze %4 : memref<1x!tpu.dma_semaphore, #tpu.memory_space<semaphore_mem>> -> memref<!tpu.dma_semaphore, #tpu.memory_space<semaphore_mem>>
    tpu.enqueue_dma source(%2 : memref<8x32xf32, #tpu.memory_space<any>>) target(%3 : memref<8x32xf32, #tpu.memory_space<any>>) target_semaphore(%5 : memref<!tpu.dma_semaphore, #tpu.memory_space<semaphore_mem>>)
    %c0_i32_4 = arith.constant 0 : i32
    %c0_i32_5 = arith.constant 0 : i32
    %6 = tpu.memref_slice %arg2[%1, %c0_i32_5] : memref<64x32xf32, #tpu.memory_space<any>> -> memref<8x32xf32, #tpu.memory_space<any>>
    %c0_i32_6 = arith.constant 0 : i32
    %c0_i32_7 = arith.constant 0 : i32
    %7 = tpu.memref_slice %arg3[%c0_i32_6, %c0_i32_7] : memref<8x32xf32, #tpu.memory_space<any>> -> memref<8x32xf32, #tpu.memory_space<any>>
    %8 = tpu.memref_slice %arg4[%c0_i32_4] : memref<1x!tpu.dma_semaphore, #tpu.memory_space<semaphore_mem>> -> memref<1x!tpu.dma_semaphore, #tpu.memory_space<semaphore_mem>>
    %9 = tpu.memref_squeeze %8 : memref<1x!tpu.dma_semaphore, #tpu.memory_space<semaphore_mem>> -> memref<!tpu.dma_semaphore, #tpu.memory_space<semaphore_mem>>
    tpu.wait_dma2 semaphore(%9 : memref<!tpu.dma_semaphore, #tpu.memory_space<semaphore_mem>>) src(%6 : memref<8x32xf32, #tpu.memory_space<any>>) dst(%7 : memref<8x32xf32, #tpu.memory_space<any>>)
    return
  }
}

</mosaic_0001>

<llo_original>
// kernel: tpu_custom_call.1
$region0: #{tpu_custom_call.1}
  #allocation0 [shape = 'u32[]', space=smem, size = 0x4, offset = 0x4, fixed_abs, tag = 'smem constant byte address 0x4 - core index']
  #allocation1 [shape = 'u32[144,128]{1,0:T(1,128)}', space=vmem, size = 0x12000, scoped, tag = 'internal scratch']
  #allocation2 [shape = 's32[1]{0}', space=sflag, size = 0x4, scoped, tag = 'scratch operand']
  #allocation3 [shape = 's32[1]{0}', space=sflag, size = 0x4, scoped, tag = 'scoped memory for tpu_custom_call.1']
  #allocation4 [shape = 's32[1]{0:T(128)S(6)}', space=smem, size = 0x200, scoped, tag = 'prefetched SMEM operand 0']
  #allocation5 [shape = 's32[]', space=sflag, size = 0x4, offset = 0, fixed_abs, tag = 'sflag constant byte address 0x0 - dummy sync flag']
  #allocation6 [shape = 's32[]', space=sflag, size = 0x4, offset = 0, fixed_abs, tag = 'sflag constant byte address 0x0 - dummy sync flag']
  #allocation7 [shape = 'u32[]', space=smem, size = 0x4, offset = 0x44, fixed_abs, tag = 'smem constant byte address 0x44 - assertion arg 0']
  #allocation8 [shape = 'u32[]', space=smem, size = 0x4, offset = 0x48, fixed_abs, tag = 'smem constant byte address 0x48 - assertion arg 1']
  %s0 = inlined_call_operand.<no memory space> [shape: s32[1], index: 0, kind: input, shape index: {}]
  %s1 = inlined_call_operand.vmem [shape: f32[64,32], index: 1, kind: input, shape index: {}]
  %s2 = inlined_call_operand.hbm [shape: f32[8,32], index: 2, kind: output, shape index: {}]
  %s3 = sld [smem:[#allocation0]]
  $region6: #{tpu_custom_call.1} parent=0
    _
  %s5 = ssub.s32 1, %s3
  %s6 = scalar_select 0, %s5, %s3
  %7 = sst [smem:[#allocation4]] %s0
  %s8 = sld [smem:[#allocation4]]
  %s9 = scalar_lea.vmem %s1, %s8
  // Predicated region
  $region2: #{tpu_custom_call.1} parent=0 // pred_check
    _
  $region3: #{tpu_custom_call.1} parent=0 // pred_check_branch
    %11 = sbr.rel target = $region5
  $region4: #{tpu_custom_call.1} parent=0 // pred_region
    %12 = sst [smem:[#allocation7]] [#allocation6]
    %13 = sst [smem:[#allocation8]] [#allocation5]
  $region5: #{tpu_custom_call.1} parent=0 // pred_fallthru
    _
  %15 = shalt.err (0)
  %s17 = sshll.u32 %s9, 4
  %s18 = int_to_ptr.vmem [resolvable:$true] %s17
  %20 = dma.vmem_to_hbm [thread:$0]  %s18, 128, %s2, [#allocation2]
  %s21 = smul.u32 8, 1
  %s22 = sshll.u32 %s21, 4
  %23 = dma.done [#allocation2], %s22
  %24 = vsyncmov [#allocation2]
  %s25 = vpop.sfrf %24
  %p26 = scmp.eq.s32.totalorder %s25, 0
  %p27 = pneg %p26
  %29 = shalt.err (%p27)

</llo_original>
